<compile_context>
chip_gen: v6e
topology: v6e:2x2x1
jax: 0.10.0
libtpu: 0.0.40
codegen_flags: <defaults>
</compile_context>

<pallas_src>
import jax
import jax.numpy as jnp
from jax.experimental import pallas as pl
from jax.experimental.pallas import tpu as pltpu


def _bilinear_up2_matrix(size):
    """(size, 2*size) matrix M such that (v @ M) is the 2x bilinear upsample of v along its
    last axis with PyTorch's Upsample(scale_factor=2, mode='bilinear', align_corners=False)
    convention (edge-clamped)."""
    J = jnp.arange(2 * size, dtype=jnp.float32)
    s = jnp.maximum((J + 0.5) / 2.0 - 0.5, 0.0)
    i0 = jnp.minimum(jnp.floor(s), size - 1)
    f = s - i0
    i1 = jnp.minimum(i0 + 1, size - 1)
    i = jnp.arange(size, dtype=jnp.float32)[:, None]          # (size, 1)
    m = (i == i0[None, :]).astype(jnp.float32) * (1.0 - f)[None, :] \
        + (i == i1[None, :]).astype(jnp.float32) * f[None, :]
    return m                                                   # (size, 2*size)


def skip_upsample_kernel(w_ref, u_ref, x_ref, y_ref, o_ref):
    # w_ref: (Cout, Cin)        f32, VMEM-resident (one MXU dot, no SMEM scalar splats)
    # u_ref: (H*W, 2H*2W)       flattened bilinear upsample operator, VMEM-resident
    # x_ref: (1, Cin, H*W)      lane-dense input slab  (native NCHW, flattened for free)
    # y_ref: (1, Cout, 2H*2W)   lane-dense skip slab
    # o_ref: (1, Cout, 2H*2W)   lane-dense output slab
    # (1) 1x1 conv commuted ahead of the (linear) upsample: single batched MXU dot.
    z = jnp.dot(w_ref[...], x_ref[0], preferred_element_type=jnp.float32)     # (Cout, HW) f32
    # (2) 2x bilinear upsample of every channel in one dot; the even/odd interleave is
    #     baked into U, so the result is already in the flattened native layout.
    up = jnp.dot(z.astype(u_ref.dtype), u_ref[...],
                 preferred_element_type=jnp.float32)                          # (Cout, 4HW) f32
    # (3) fused skip-add in f32, cast last -> dense vst to the lane-dense output slab.
    o_ref[0] = (up + y_ref[0].astype(jnp.float32)).astype(o_ref.dtype)


def skip_upsample_pallas(x_nchw, y_nchw, w_oihw):
    """x: (N, Cin, H, W), y: (N, Cout, 2H, 2W), w: (Cout, Cin, 1, 1) -> (N, Cout, 2H, 2W)."""
    N, Cin, H, W = x_nchw.shape
    Cout = w_oihw.shape[0]
    HW, HW4 = H * W, 4 * H * W

    wm = w_oihw.reshape(Cout, Cin).astype(jnp.float32)          # tiny, VMEM

    # Flattened separable upsample operator: U[p*W+q, r*2W+j] = M_H[p,r] * M_W[q,j], i.e.
    # out_flat = in_flat @ U  ==  M_H^T @ in @ M_W  (2x bilinear, align_corners=False).
    # Bilinear weights (0.25/0.75) and their products are exact in bf16, so U inherits the
    # input dtype (bf16 model -> bf16, MXU-native operands, half the resident VMEM).
    u = jnp.kron(_bilinear_up2_matrix(H), _bilinear_up2_matrix(W)).astype(x_nchw.dtype)

    # Free reshapes of contiguous NCHW tensors -> lane-dense slabs (256 / 1024 lanes here):
    # unmasked vld/vst, no lane padding in VMEM, no extra HBM traffic.
    x_flat = x_nchw.reshape(N, Cin, HW)
    y_flat = y_nchw.reshape(N, Cout, HW4)

    itemsize = x_nchw.dtype.itemsize
    flops = 2 * N * (Cout * Cin * HW + Cout * HW * HW4)
    bytes_accessed = (x_flat.size * itemsize                      # x in
                      + 2 * y_flat.size * y_nchw.dtype.itemsize   # y in + out
                      + wm.size * 4 + u.size * u.dtype.itemsize)  # resident operands

    out_flat = pl.pallas_call(
        skip_upsample_kernel,
        out_shape=jax.ShapeDtypeStruct((N, Cout, HW4), x_nchw.dtype),
        grid_spec=pltpu.PrefetchScalarGridSpec(
            num_scalar_prefetch=0,
            grid=(N,),                                            # >=2 parallel steps for v7x dual-TC
            in_specs=[
                pl.BlockSpec((Cout, Cin), lambda n: (0, 0)),        # wm (VMEM, resident)
                pl.BlockSpec((HW, HW4), lambda n: (0, 0)),          # U  (VMEM, resident)
                pl.BlockSpec((1, Cin, HW), lambda n: (n, 0, 0)),    # x slab
                pl.BlockSpec((1, Cout, HW4), lambda n: (n, 0, 0)),  # y slab
            ],
            out_specs=pl.BlockSpec((1, Cout, HW4), lambda n: (n, 0, 0)),
        ),
        compiler_params=pltpu.CompilerParams(dimension_semantics=("parallel",)),
        cost_estimate=pl.CostEstimate(flops=flops, transcendentals=0,
                                      bytes_accessed=bytes_accessed),
    )(wm, u, x_flat, y_flat)

    return out_flat.reshape(N, Cout, 2 * H, 2 * W)


def ref_skip_upsample(x, y, w):
    """Pure-JAX reference matching PyTorch Upsample(bilinear, align_corners=False) + 1x1 conv + add."""
    N, Cin, H, W = x.shape

    def idx(size):
        d = jnp.arange(2 * size, dtype=jnp.float32)
        s = jnp.maximum((d + 0.5) / 2.0 - 0.5, 0.0)
        i0 = jnp.minimum(jnp.floor(s), size - 1).astype(jnp.int32)
        i1 = jnp.minimum(i0 + 1, size - 1)
        f = s - i0.astype(jnp.float32)
        return i0, i1, f

    h0, h1, fh = idx(H)
    w0, w1, fw = idx(W)
    g = lambda hi, wi: x[:, :, hi, :][:, :, :, wi]
    fh_ = fh[None, None, :, None]
    fw_ = fw[None, None, None, :]
    up = ((1 - fh_) * ((1 - fw_) * g(h0, w0) + fw_ * g(h0, w1))
          + fh_ * ((1 - fw_) * g(h1, w0) + fw_ * g(h1, w1)))
    conv = jnp.einsum("nchw,dc->ndhw", up, w.reshape(w.shape[0], Cin))
    return conv + y


if __name__ == "__main__":
    key = jax.random.PRNGKey(0)
    N, in_channels, s_factor, H, W = 2, 4, 4, 16, 16
    Cin, Cout = in_channels + s_factor, in_channels

    kx, ky, kw = jax.random.split(key, 3)
    x = jax.random.normal(kx, (N, Cin, H, W), jnp.float32)
    y = jax.random.normal(ky, (N, Cout, 2 * H, 2 * W), jnp.float32)
    w = jax.random.normal(kw, (Cout, Cin, 1, 1), jnp.float32) * 0.1  # deterministic 1x1 conv weight

    out = skip_upsample_pallas(x, y, w)
    jax.block_until_ready(out)

    ref = ref_skip_upsample(x, y, w)
    assert out.shape == (N, Cout, 2 * H, 2 * W), out.shape
    assert jnp.allclose(out, ref, atol=1e-4, rtol=1e-4), float(jnp.max(jnp.abs(out - ref)))
    print("KERNEL_OK")
</pallas_src>

<mosaic_0001>
module attributes {stable_mosaic.version = 11 : i64} {
  func.func @skip_upsample_kernel(%arg0: i32, %arg1: memref<4x8xf32, #tpu.memory_space<vmem>>, %arg2: memref<256x1024xf32, #tpu.memory_space<vmem>>, %arg3: memref<1x8x256xf32, #tpu.memory_space<vmem>>, %arg4: memref<1x4x1024xf32, #tpu.memory_space<vmem>>, %arg5: memref<1x4x1024xf32, #tpu.memory_space<vmem>>) attributes {dimension_semantics = [#tpu.dimension_semantics<parallel>], iteration_bounds = array<i64: 2>, scalar_prefetch = 0 : i64, scratch_operands = 0 : i64, tpu.core_type = #tpu.core_type<tc>, window_params = [{pipeline_mode = #tpu.pipeline_mode<synchronous>, transform_indices = @transform_0, window_bounds = array<i64: 4, 8>}, {pipeline_mode = #tpu.pipeline_mode<synchronous>, transform_indices = @transform_1, window_bounds = array<i64: 256, 1024>}, {transform_indices = @transform_2, window_bounds = array<i64: 1, 8, 256>}, {transform_indices = @transform_3, window_bounds = array<i64: 1, 4, 1024>}, {transform_indices = @transform_4, window_bounds = array<i64: 1, 4, 1024>}]} {
    %c0 = arith.constant 0 : index
    %c0_0 = arith.constant 0 : index
    %0 = vector.load %arg1[%c0, %c0_0] : memref<4x8xf32, #tpu.memory_space<vmem>>, vector<4x8xf32>
    %c0_1 = arith.constant 0 : index
    %c0_2 = arith.constant 0 : index
    %c0_3 = arith.constant 0 : index
    %1 = vector.load %arg3[%c0_1, %c0_2, %c0_3] : memref<1x8x256xf32, #tpu.memory_space<vmem>>, vector<1x8x256xf32>
    %2 = vector.shape_cast %1 : vector<1x8x256xf32> to vector<8x256xf32>
    %cst = arith.constant dense<0.000000e+00> : vector<4x256xf32>
    %3 = tpu.matmul %0, %2, %cst {dimension_numbers = #tpu.dot_dimension_numbers<[1], [0], [0], [1], [0, 0, 1, 1], [], []>} : vector<4x8xf32>, vector<8x256xf32>, vector<4x256xf32> -> vector<4x256xf32>
    %c0_4 = arith.constant 0 : index
    %c0_5 = arith.constant 0 : index
    %4 = vector.load %arg2[%c0_4, %c0_5] : memref<256x1024xf32, #tpu.memory_space<vmem>>, vector<256x1024xf32>
    %cst_6 = arith.constant dense<0.000000e+00> : vector<4x1024xf32>
    %5 = tpu.matmul %3, %4, %cst_6 {dimension_numbers = #tpu.dot_dimension_numbers<[1], [0], [0], [1], [0, 0, 1, 1], [], []>} : vector<4x256xf32>, vector<256x1024xf32>, vector<4x1024xf32> -> vector<4x1024xf32>
    %c0_7 = arith.constant 0 : index
    %c0_8 = arith.constant 0 : index
    %c0_9 = arith.constant 0 : index
    %6 = vector.load %arg4[%c0_7, %c0_8, %c0_9] : memref<1x4x1024xf32, #tpu.memory_space<vmem>>, vector<1x4x1024xf32>
    %7 = vector.shape_cast %6 : vector<1x4x1024xf32> to vector<4x1024xf32>
    %8 = arith.addf %5, %7 : vector<4x1024xf32>
    %c0_10 = arith.constant 0 : index
    %c0_11 = arith.constant 0 : index
    %c0_12 = arith.constant 0 : index
    %9 = vector.load %arg5[%c0_10, %c0_11, %c0_12] : memref<1x4x1024xf32, #tpu.memory_space<vmem>>, vector<1x4x1024xf32>
    %10 = vector.shape_cast %9 : vector<1x4x1024xf32> to vector<4x1024xf32>
    %11 = vector.shape_cast %8 : vector<4x1024xf32> to vector<1x4x1024xf32>
    tpu.vector_store %arg5[%c0_10, %c0_11, %c0_12], %11 {strides = array<i32>} : memref<1x4x1024xf32, #tpu.memory_space<vmem>>, vector<1x4x1024xf32>,
    return
  }
  func.func @transform_0(%arg0: i32) -> (i32, i32) {
    %c0_i32 = arith.constant 0 : i32
    %c0_i32_0 = arith.constant 0 : i32
    %c0_i32_1 = arith.constant 0 : i32
    return %c0_i32, %c0_i32_0 : i32, i32
  }
  func.func @transform_1(%arg0: i32) -> (i32, i32) {
    %c0_i32 = arith.constant 0 : i32
    %c0_i32_0 = arith.constant 0 : i32
    %c0_i32_1 = arith.constant 0 : i32
    return %c0_i32, %c0_i32_0 : i32, i32
  }
  func.func @transform_2(%arg0: i32) -> (i32, i32, i32) {
    %c0_i32 = arith.constant 0 : i32
    %c0_i32_0 = arith.constant 0 : i32
    %c0_i32_1 = arith.constant 0 : i32
    return %arg0, %c0_i32, %c0_i32_0 : i32, i32, i32
  }
  func.func @transform_3(%arg0: i32) -> (i32, i32, i32) {
    %c0_i32 = arith.constant 0 : i32
    %c0_i32_0 = arith.constant 0 : i32
    %c0_i32_1 = arith.constant 0 : i32
    return %arg0, %c0_i32, %c0_i32_0 : i32, i32, i32
  }
  func.func @transform_4(%arg0: i32) -> (i32, i32, i32) {
    %c0_i32 = arith.constant 0 : i32
    %c0_i32_0 = arith.constant 0 : i32
    %c0_i32_1 = arith.constant 0 : i32
    return %arg0, %c0_i32, %c0_i32_0 : i32, i32, i32
  }
}

</mosaic_0001>

<llo_original>
// kernel: tpu_custom_call.1
$region0: #{tpu_custom_call.1}
  #allocation0 [shape = 'u32[]', space=smem, size = 0x4, offset = 0x4, fixed_abs, tag = 'smem constant byte address 0x4 - core index']
  #allocation1 [shape = 'u32[144,128]{1,0:T(1,128)}', space=vmem, size = 0x12000, scoped, tag = 'internal scratch']
  %s0 = inlined_call_operand.hbm [shape: f32[4,8], index: 0, kind: input, shape index: {}]
  %s1 = inlined_call_operand.hbm [shape: f32[256,1024], index: 1, kind: input, shape index: {}]
  %s2 = inlined_call_operand.hbm [shape: f32[2,8,256], index: 2, kind: input, shape index: {}]
  %s3 = inlined_call_operand.hbm [shape: f32[2,4,1024], index: 3, kind: input, shape index: {}]
  %s4 = inlined_call_operand.hbm [shape: f32[2,4,1024], index: 4, kind: output, shape index: {}]
  %s5 = sld [smem:[#allocation0]]
  $region65: #{tpu_custom_call.1} parent=0
    _
  %s7 = ssub.s32 1, %s5
  %s8 = scalar_select 0, %s7, %s5
  $region1: #{tpu_custom_call.1} parent=0
    #allocation2 [shape = 'u8[2048]{0}', space=vmem, size = 0x800, scoped, tag = 'input window, operand 0, single buffered']
    #allocation3 [shape = 's32[2]{0}', space=sflag, size = 0x8, scoped, tag = 'scoped memory for tpu_custom_call.1']
    #allocation4 [shape = 's32[2]{0}', space=sflag, size = 0x8, scoped, tag = 'scoped memory for tpu_custom_call.1']
    #allocation5 [shape = 'u8[1048576]{0}', space=vmem, size = 0x100000, scoped, tag = 'input window, operand 1, single buffered']
    #allocation6 [shape = 's32[1]{0}', space=sflag, size = 0x4, scoped, tag = 'scoped memory for tpu_custom_call.1']
    #allocation7 [shape = 'u8[16384]{0}', space=vmem, size = 0x4000, scoped, tag = 'input window, operand 2']
    #allocation8 [shape = 'u8[32768]{0}', space=vmem, size = 0x8000, scoped, tag = 'input window, operand 3']
    #allocation9 [shape = 'u8[32768]{0}', space=vmem, size = 0x8000, scoped, tag = 'output window, operand 0']
    %9 = vsyncpa [#allocation3], 0
    %10 = vsyncpa [#allocation6], 0
    %11 = vsyncpa [#allocation4], 0
    %s12 = scalar_lea.sflag [#allocation4], 1
    %13 = vsyncpa %s12, 0
    loop: start=0, step=1, limit=4
    $region2: #{tpu_custom_call.1} parent=1 // loop_pre_header
      _
    $region3: #{tpu_custom_call.1} parent=1 // loop_header
      %s15 = sphi 0, %s19
      %p16 = scmp.ge.s32.totalorder %s15, 4
      %s23 = sphi 0, %s23
      %s25 = sphi 0, %s23
      %s26 = sphi 0, %s25
      %s40 = sphi 0, %s26
      %s44 = sphi 0, %s44
      %s46 = sphi 0, %s44
      %s47 = sphi 0, %s46
      %s61 = sphi 0, %s47
      %s67 = sphi 0, %s69
      %s70 = sphi 0, %s67
      %s71 = sphi 0, %s70
      %s87 = sphi 0, %s71
      %s93 = sphi 0, %s95
      %s96 = sphi 0, %s93
      %s97 = sphi 0, %s96
      %s113 = sphi 0, %s97
      %s119 = sphi 0, %s121
      %s122 = sphi 0, %s119
      %s123 = sphi 0, %s122
      %s139 = sphi 0, %s123
    $region4: #{tpu_custom_call.1} parent=1 // loop_header_branch
      %18 = sbr.rel (%p16) target = $region8
    $region5: #{tpu_custom_call.1} parent=1 // loop_body
      %s20 = ssub.s32 %s15, 1
      %s21 = ssub.s32 %s15, 2
      %s22 = sadd.s32 %s15, 1
      %s24 = sadd.s32 %s23, 1
      %p27 = scmp.eq.s32.totalorder %s15, 1
      %p28 = scmp.ne.s32.totalorder %s23, %s25
      %p29 = scmp.eq.s32.totalorder %s15, 0
      %p30 = por %p28, %p29
      %p31 = scmp.ne.s32.totalorder %s23, %s25
      %p32 = scmp.eq.s32.totalorder %s20, 1
      %p33 = por %p31, %p32
      %p34 = scmp.ne.s32.totalorder %s25, %s26
      %p35 = scmp.eq.s32.totalorder %s20, 0
      %p36 = por %p34, %p35
      %p37 = scmp.ne.s32.totalorder %s25, %s26
      %p38 = scmp.eq.s32.totalorder %s21, 1
      %p39 = por %p37, %p38
      %p41 = scmp.ne.s32.totalorder %s26, %s40
      %p42 = scmp.eq.s32.totalorder %s21, 0
      %p43 = por %p41, %p42
      %s45 = sadd.s32 %s44, 1
      %p48 = scmp.eq.s32.totalorder %s15, 1
      %p49 = scmp.ne.s32.totalorder %s44, %s46
      %p50 = scmp.eq.s32.totalorder %s15, 0
      %p51 = por %p49, %p50
      %p52 = scmp.ne.s32.totalorder %s44, %s46
      %p53 = scmp.eq.s32.totalorder %s20, 1
      %p54 = por %p52, %p53
      %p55 = scmp.ne.s32.totalorder %s46, %s47
      %p56 = scmp.eq.s32.totalorder %s20, 0
      %p57 = por %p55, %p56
      %p58 = scmp.ne.s32.totalorder %s46, %s47
      %p59 = scmp.eq.s32.totalorder %s21, 1
      %p60 = por %p58, %p59
      %p62 = scmp.ne.s32.totalorder %s47, %s61
      %p63 = scmp.eq.s32.totalorder %s21, 0
      %p64 = por %p62, %p63
      %s65 = ssub.s32 %s15, %s22
      %p66 = scmp.eq.s32.totalorder %s65, 0
      %s68 = sadd.s32 %s67, 1
      %s69 = scalar_select %p66, %s67, %s68
      %p72 = pneg %p66
      %p73 = scmp.eq.s32.totalorder %s15, 1
      %p74 = por %p72, %p73
      %p75 = scmp.ne.s32.totalorder %s67, %s70
      %p76 = scmp.eq.s32.totalorder %s15, 0
      %p77 = por %p75, %p76
      %p78 = scmp.ne.s32.totalorder %s67, %s70
      %p79 = scmp.eq.s32.totalorder %s20, 1
      %p80 = por %p78, %p79
      %p81 = scmp.ne.s32.totalorder %s70, %s71
      %p82 = scmp.eq.s32.totalorder %s20, 0
      %p83 = por %p81, %p82
      %p84 = scmp.ne.s32.totalorder %s70, %s71
      %p85 = scmp.eq.s32.totalorder %s21, 1
      %p86 = por %p84, %p85
      %p88 = scmp.ne.s32.totalorder %s71, %s87
      %p89 = scmp.eq.s32.totalorder %s21, 0
      %p90 = por %p88, %p89
      %s91 = ssub.s32 %s15, %s22
      %p92 = scmp.eq.s32.totalorder %s91, 0
      %s94 = sadd.s32 %s93, 1
      %s95 = scalar_select %p92, %s93, %s94
      %p98 = pneg %p92
      %p99 = scmp.eq.s32.totalorder %s15, 1
      %p100 = por %p98, %p99
      %p101 = scmp.ne.s32.totalorder %s93, %s96
      %p102 = scmp.eq.s32.totalorder %s15, 0
      %p103 = por %p101, %p102
      %p104 = scmp.ne.s32.totalorder %s93, %s96
      %p105 = scmp.eq.s32.totalorder %s20, 1
      %p106 = por %p104, %p105
      %p107 = scmp.ne.s32.totalorder %s96, %s97
      %p108 = scmp.eq.s32.totalorder %s20, 0
      %p109 = por %p107, %p108
      %p110 = scmp.ne.s32.totalorder %s96, %s97
      %p111 = scmp.eq.s32.totalorder %s21, 1
      %p112 = por %p110, %p111
      %p114 = scmp.ne.s32.totalorder %s97, %s113
      %p115 = scmp.eq.s32.totalorder %s21, 0
      %p116 = por %p114, %p115
      %s117 = ssub.s32 %s15, %s22
      %p118 = scmp.eq.s32.totalorder %s117, 0
      %s120 = sadd.s32 %s119, 1
      %s121 = scalar_select %p118, %s119, %s120
      %p124 = pneg %p118
      %p125 = scmp.eq.s32.totalorder %s15, 1
      %p126 = por %p124, %p125
      %p127 = scmp.ne.s32.totalorder %s119, %s122
      %p128 = scmp.eq.s32.totalorder %s15, 0
      %p129 = por %p127, %p128
      %p130 = scmp.ne.s32.totalorder %s119, %s122
      %p131 = scmp.eq.s32.totalorder %s20, 1
      %p132 = por %p130, %p131
      %p133 = scmp.ne.s32.totalorder %s122, %s123
      %p134 = scmp.eq.s32.totalorder %s20, 0
      %p135 = por %p133, %p134
      %p136 = scmp.ne.s32.totalorder %s122, %s123
      %p137 = scmp.eq.s32.totalorder %s21, 1
      %p138 = por %p136, %p137
      %p140 = scmp.ne.s32.totalorder %s123, %s139
      %p141 = scmp.eq.s32.totalorder %s21, 0
      %p142 = por %p140, %p141
      %p143 = scmp.le.s32.totalorder 1, %s15
      %p144 = scmp.lt.s32.totalorder %s15, 3
      %p145 = pnand %p143, %p144
      %p146 = pneg %p145
      // Predicated region
      $region9: #{tpu_custom_call.1} parent=5 // pred_check
        _
      $region10: #{tpu_custom_call.1} parent=5 // pred_check_branch
        %148 = sbr.rel (%p145) target = $region12
      $region11: #{tpu_custom_call.1} parent=5 // pred_region
        %s149 = ssub.s32 %s15, 1
        // Predicated region
        $region13: #{tpu_custom_call.1} parent=11 // pred_check
          %p150 = pneg %p36
        $region14: #{tpu_custom_call.1} parent=11 // pred_check_branch
          %152 = sbr.rel (%p150) target = $region16
        $region15: #{tpu_custom_call.1} parent=11 // pred_region
          %s154 = ssub.s32 64, 64
          %155 = vsyncadd [#allocation3], %s154
          %s157 = sshll.u32 [#allocation2], 4
          %s158 = int_to_ptr.vmem [resolvable:$true] %s157
          %160 = dma.hbm_to_vmem [thread:$0]  %s0, 64, %s158, [#allocation3]
        $region16: #{tpu_custom_call.1} parent=11 // pred_fallthru
          _
        // Predicated region
        $region17: #{tpu_custom_call.1} parent=11 // pred_check
          %p161 = pneg %p57
        $region18: #{tpu_custom_call.1} parent=11 // pred_check_branch
          %163 = sbr.rel (%p161) target = $region20
        $region19: #{tpu_custom_call.1} parent=11 // pred_region
          %s165 = ssub.s32 32768, 32768
          %166 = vsyncadd [#allocation6], %s165
          %s167 = sshll.u32 [#allocation5], 4
          %s168 = int_to_ptr.vmem [resolvable:$true] %s167
          %173 = dma.hbm_to_vmem [thread:$0]  %s1, 32768, %s168, [#allocation6], 1024, 1024, 64
        $region20: #{tpu_custom_call.1} parent=11 // pred_fallthru
          _
      $region12: #{tpu_custom_call.1} parent=5 // pred_fallthru
        _
      %p174 = scmp.lt.s32.totalorder %s15, 2
      // Predicated region
      $region21: #{tpu_custom_call.1} parent=5 // pred_check
        %p175 = pneg %p174
      $region22: #{tpu_custom_call.1} parent=5 // pred_check_branch
        %177 = sbr.rel (%p175) target = $region24
      $region23: #{tpu_custom_call.1} parent=5 // pred_region
        // Predicated region
        $region25: #{tpu_custom_call.1} parent=23 // pred_check
          %p178 = pneg %p77
        $region26: #{tpu_custom_call.1} parent=23 // pred_check_branch
          %180 = sbr.rel (%p178) target = $region28
        $region27: #{tpu_custom_call.1} parent=23 // pred_region
          %s181 = sand.u32 %s15, 1
          %s182 = scalar_lea.sflag [#allocation3], %s181
          %s183 = sand.u32 %s67, 1
          %s184 = smul.addr %s183, 16
          %s185 = scalar_lea.vmem [#allocation7], %s184
          %s187 = ssub.s32 256, 256
          %188 = vsyncadd %s182, %s187
          %s189 = smul.addr %s15, 2
          %s190 = smul.addr %s189, 128
          %s191 = scalar_lea.hbm %s2, %s190
          %s193 = sshll.u32 %s185, 4
          %s194 = int_to_ptr.vmem [resolvable:$true] %s193
          %196 = dma.hbm_to_vmem [thread:$0]  %s191, 256, %s194, %s182
        $region28: #{tpu_custom_call.1} parent=23 // pred_fallthru
          _
        // Predicated region
        $region29: #{tpu_custom_call.1} parent=23 // pred_check
          %p197 = pneg %p103
        $region30: #{tpu_custom_call.1} parent=23 // pred_check_branch
          %199 = sbr.rel (%p197) target = $region32
        $region31: #{tpu_custom_call.1} parent=23 // pred_region
          %s200 = sand.u32 %s15, 1
          %s201 = scalar_lea.sflag [#allocation3], %s200
          %s202 = sand.u32 %s93, 1
          %s203 = smul.addr %s202, 32
          %s204 = scalar_lea.vmem [#allocation8], %s203
          %s206 = ssub.s32 512, 512
          %207 = vsyncadd %s201, %s206
          %s208 = smul.addr %s15, 8
          %s209 = smul.addr %s208, 64
          %s210 = scalar_lea.hbm %s3, %s209
          %s212 = sshll.u32 %s204, 4
          %s213 = int_to_ptr.vmem [resolvable:$true] %s212
          %215 = dma.hbm_to_vmem [thread:$0]  %s210, 512, %s213, %s201
        $region32: #{tpu_custom_call.1} parent=23 // pred_fallthru
          _
      $region24: #{tpu_custom_call.1} parent=5 // pred_fallthru
        _
      %p216 = scmp.le.s32.totalorder 1, %s15
      %p217 = scmp.lt.s32.totalorder %s15, 3
      %p218 = pnand %p216, %p217
      %p219 = pneg %p218
      // Predicated region
      $region33: #{tpu_custom_call.1} parent=5 // pred_check
        _
      $region34: #{tpu_custom_call.1} parent=5 // pred_check_branch
        %221 = sbr.rel (%p218) target = $region36
      $region35: #{tpu_custom_call.1} parent=5 // pred_region
        %s222 = ssub.s32 %s15, 1
        // Predicated region
        $region37: #{tpu_custom_call.1} parent=35 // pred_check
          %p223 = pneg %p36
        $region38: #{tpu_custom_call.1} parent=35 // pred_check_branch
          %225 = sbr.rel (%p223) target = $region40
        $region39: #{tpu_custom_call.1} parent=35 // pred_region
          %226 = dma.done [#allocation3], 64
        $region40: #{tpu_custom_call.1} parent=35 // pred_fallthru
          _
        // Predicated region
        $region41: #{tpu_custom_call.1} parent=35 // pred_check
          %p227 = pneg %p57
        $region42: #{tpu_custom_call.1} parent=35 // pred_check_branch
          %229 = sbr.rel (%p227) target = $region44
        $region43: #{tpu_custom_call.1} parent=35 // pred_region
          %230 = dma.done [#allocation6], 32768
        $region44: #{tpu_custom_call.1} parent=35 // pred_fallthru
          _
        %s231 = sand.u32 %s20, 1
        %s232 = scalar_lea.sflag [#allocation3], %s231
        %s233 = sand.u32 %s70, 1
        %s234 = smul.addr %s233, 16
        %s235 = scalar_lea.vmem [#allocation7], %s234
        // Predicated region
        $region45: #{tpu_custom_call.1} parent=35 // pred_check
          %p236 = pneg %p83
        $region46: #{tpu_custom_call.1} parent=35 // pred_check_branch
          %238 = sbr.rel (%p236) target = $region48
        $region47: #{tpu_custom_call.1} parent=35 // pred_region
          %239 = dma.done %s232, 256
        $region48: #{tpu_custom_call.1} parent=35 // pred_fallthru
          _
        %s240 = sand.u32 %s20, 1
        %s241 = scalar_lea.sflag [#allocation3], %s240
        %s242 = sand.u32 %s96, 1
        %s243 = smul.addr %s242, 32
        %s244 = scalar_lea.vmem [#allocation8], %s243
        // Predicated region
        $region49: #{tpu_custom_call.1} parent=35 // pred_check
          %p245 = pneg %p109
        $region50: #{tpu_custom_call.1} parent=35 // pred_check_branch
          %247 = sbr.rel (%p245) target = $region52
        $region51: #{tpu_custom_call.1} parent=35 // pred_region
          %248 = dma.done %s241, 512
        $region52: #{tpu_custom_call.1} parent=35 // pred_fallthru
          _
        %p249 = pneg %p36
        %p250 = pneg %p33
        %p251 = pneg %p57
        %p252 = pneg %p54
        %s253 = sand.u32 %s20, 1
        %s254 = scalar_lea.sflag [#allocation3], %s253
        %s255 = sand.u32 %s70, 1
        %s256 = smul.addr %s255, 16
        %s257 = scalar_lea.vmem [#allocation7], %s256
        %p258 = pneg %p83
        %p259 = pneg %p80
        %s260 = sand.u32 %s20, 1
        %s261 = scalar_lea.sflag [#allocation3], %s260
        %s262 = sand.u32 %s96, 1
        %s263 = smul.addr %s262, 32
        %s264 = scalar_lea.vmem [#allocation8], %s263
        %p265 = pneg %p109
        %p266 = pneg %p106
        %p267 = pneg %p135
        %p268 = pneg %p132
        %s269 = sand.u32 %s122, 1
        %s270 = scalar_lea.sflag [#allocation4], %s269
        %s271 = sand.u32 %s122, 1
        %s272 = smul.addr %s271, 32
        %s273 = scalar_lea.vmem [#allocation9], %s272
        %v274 = vld [vmem:[#allocation2] sm:$0xf]
        %v275 = vld [vmem:[%s235] sm:$0xff]
        %v276 = vld [vmem:[%s235 + $0x8] sm:$0xff]
        %vm277 = vcmask 64512
        %v279 = vsel %vm277, %v274, 0
        %281 = vmatprep.subr.mxu0 0.0
        %282 = vmatpush1.msra.mxu0 0.0
        %283 = vmatprep.subr.mxu0 0.0
        %284 = vmatpush1.msra.mxu0 0.0
        %285 = vmatprep.subr.mxu0 0.0
        %286 = vmatpush1.msra.mxu0 0.0
        %287 = vmatprep.subr.mxu0 0.0
        %288 = vmatpush1.msra.mxu0 0.0
        %289 = vmatprep.subr.mxu0 0.0
        %290 = vmatpush1.msra.mxu0 0.0
        %291 = vmatprep.subr.mxu0 0.0
        %292 = vmatpush1.msra.mxu0 0.0
        %293 = vmatprep.subr.mxu0 0.0
        %294 = vmatpush1.msra.mxu0 0.0
        %295 = vmatprep.subr.mxu0 0.0
        %296 = vmatpush1.msra.mxu0 0.0
        %297 = vmatprep.subr.mxu0 0.0
        %298 = vmatpush1.msra.mxu0 0.0
        %299 = vmatprep.subr.mxu0 0.0
        %300 = vmatpush1.msra.mxu0 0.0
        %301 = vmatprep.subr.mxu0 0.0
        %302 = vmatpush1.msra.mxu0 0.0
        %303 = vmatprep.subr.mxu0 0.0
        %304 = vmatpush1.msra.mxu0 0.0
        %305 = vmatprep.subr.mxu0 0.0
        %306 = vmatpush1.msra.mxu0 0.0
        %307 = vmatprep.subr.mxu0 0.0
        %308 = vmatpush1.msra.mxu0 0.0
        %309 = vmatprep.subr.mxu0 0.0
        %310 = vmatpush1.msra.mxu0 0.0
        %311 = vmatprep.subr.mxu0 %v276
        %312 = vmatpush1.msra.mxu0 %v275
        %313 = vmatprep.subr.mxu0 0.0
        %314 = vmatpush2.msra.mxu0 0.0
        %315 = vmatprep.subr.mxu0 0.0
        %316 = vmatpush2.msra.mxu0 0.0
        %317 = vmatprep.subr.mxu0 0.0
        %318 = vmatpush2.msra.mxu0 0.0
        %319 = vmatprep.subr.mxu0 0.0
        %320 = vmatpush2.msra.mxu0 0.0
        %321 = vmatprep.subr.mxu0 0.0
        %322 = vmatpush2.msra.mxu0 0.0
        %323 = vmatprep.subr.mxu0 0.0
        %324 = vmatpush2.msra.mxu0 0.0
        %325 = vmatprep.subr.mxu0 0.0
        %326 = vmatpush2.msra.mxu0 0.0
        %327 = vmatprep.subr.mxu0 0.0
        %328 = vmatpush2.msra.mxu0 0.0
        %329 = vmatprep.subr.mxu0 0.0
        %330 = vmatpush2.msra.mxu0 0.0
        %331 = vmatprep.subr.mxu0 0.0
        %332 = vmatpush2.msra.mxu0 0.0
        %333 = vmatprep.subr.mxu0 0.0
        %334 = vmatpush2.msra.mxu0 0.0
        %335 = vmatprep.subr.mxu0 0.0
        %336 = vmatpush2.msra.mxu0 0.0
        %337 = vmatprep.subr.mxu0 0.0
        %338 = vmatpush2.msra.mxu0 0.0
        %339 = vmatprep.subr.mxu0 0.0
        %340 = vmatpush2.msra.mxu0 0.0
        %341 = vmatprep.subr.mxu0 0.0
        %342 = vmatpush2.msra.mxu0 0.0
        %343 = vmatprep.subr.mxu0 0.0
        %344 = vmatpush2.msra.mxu0 0.0
        %345 = vmatprep.mubr.f32.mxu0 0.0
        %346 = vmatmul.mubr.f32.gmra.mxu0 %v279
        %v347 = vpop.f32.mrf.mxu0
        %v348 = vadd.f32 0.0, %v347
        %v349 = vpop.f32.mrf.mxu0
        %v350 = vadd.f32 0.0, %v349
        %351 = vdwg.mxu0
        %v352 = vld [vmem:[#allocation5] sm:$0xff]
        %v353 = vld [vmem:[#allocation5 + $0x8] sm:$0xff]
        %v354 = vld [vmem:[#allocation5 + $0x10] sm:$0xff]
        %v355 = vld [vmem:[#allocation5 + $0x18] sm:$0xff]
        %v356 = vld [vmem:[#allocation5 + $0x20] sm:$0xff]
        %v357 = vld [vmem:[#allocation5 + $0x28] sm:$0xff]
        %v358 = vld [vmem:[#allocation5 + $0x30] sm:$0xff]
        %v359 = vld [vmem:[#allocation5 + $0x38] sm:$0xff]
        %v360 = vld [vmem:[#allocation5 + $0x40] sm:$0xff]
        %v361 = vld [vmem:[#allocation5 + $0x48] sm:$0xff]
        %v362 = vld [vmem:[#allocation5 + $0x50] sm:$0xff]
        %v363 = vld [vmem:[#allocation5 + $0x58] sm:$0xff]
        %v364 = vld [vmem:[#allocation5 + $0x60] sm:$0xff]
        %v365 = vld [vmem:[#allocation5 + $0x68] sm:$0xff]
        %v366 = vld [vmem:[#allocation5 + $0x70] sm:$0xff]
        %v367 = vld [vmem:[#allocation5 + $0x78] sm:$0xff]
        %v368 = vld [vmem:[#allocation5 + $0x80] sm:$0xff]
        %v369 = vld [vmem:[#allocation5 + $0x88] sm:$0xff]
        %v370 = vld [vmem:[#allocation5 + $0x90] sm:$0xff]
        %v371 = vld [vmem:[#allocation5 + $0x98] sm:$0xff]
        %v372 = vld [vmem:[#allocation5 + $0xa0] sm:$0xff]
        %v373 = vld [vmem:[#allocation5 + $0xa8] sm:$0xff]
        %v374 = vld [vmem:[#allocation5 + $0xb0] sm:$0xff]
        %v375 = vld [vmem:[#allocation5 + $0xb8] sm:$0xff]
        %v376 = vld [vmem:[#allocation5 + $0xc0] sm:$0xff]
        %v377 = vld [vmem:[#allocation5 + $0xc8] sm:$0xff]
        %v378 = vld [vmem:[#allocation5 + $0xd0] sm:$0xff]
        %v379 = vld [vmem:[#allocation5 + $0xd8] sm:$0xff]
        %v380 = vld [vmem:[#allocation5 + $0xe0] sm:$0xff]
        %v381 = vld [vmem:[#allocation5 + $0xe8] sm:$0xff]
        %v382 = vld [vmem:[#allocation5 + $0xf0] sm:$0xff]
        %v383 = vld [vmem:[#allocation5 + $0xf8] sm:$0xff]
        %v384 = vld [vmem:[#allocation5 + $0x100] sm:$0xff]
        %v385 = vld [vmem:[#allocation5 + $0x108] sm:$0xff]
        %v386 = vld [vmem:[#allocation5 + $0x110] sm:$0xff]
        %v387 = vld [vmem:[#allocation5 + $0x118] sm:$0xff]
        %v388 = vld [vmem:[#allocation5 + $0x120] sm:$0xff]
        %v389 = vld [vmem:[#allocation5 + $0x128] sm:$0xff]
        %v390 = vld [vmem:[#allocation5 + $0x130] sm:$0xff]
        %v391 = vld [vmem:[#allocation5 + $0x138] sm:$0xff]
        %v392 = vld [vmem:[#allocation5 + $0x140] sm:$0xff]
        %v393 = vld [vmem:[#allocation5 + $0x148] sm:$0xff]
        %v394 = vld [vmem:[#allocation5 + $0x150] sm:$0xff]
        %v395 = vld [vmem:[#allocation5 + $0x158] sm:$0xff]
        %v396 = vld [vmem:[#allocation5 + $0x160] sm:$0xff]
        %v397 = vld [vmem:[#allocation5 + $0x168] sm:$0xff]
        %v398 = vld [vmem:[#allocation5 + $0x170] sm:$0xff]
        %v399 = vld [vmem:[#allocation5 + $0x178] sm:$0xff]
        %v400 = vld [vmem:[#allocation5 + $0x180] sm:$0xff]
        %v401 = vld [vmem:[#allocation5 + $0x188] sm:$0xff]
        %v402 = vld [vmem:[#allocation5 + $0x190] sm:$0xff]
        %v403 = vld [vmem:[#allocation5 + $0x198] sm:$0xff]
        %v404 = vld [vmem:[#allocation5 + $0x1a0] sm:$0xff]
        %v405 = vld [vmem:[#allocation5 + $0x1a8] sm:$0xff]
        %v406 = vld [vmem:[#allocation5 + $0x1b0] sm:$0xff]
        %v407 = vld [vmem:[#allocation5 + $0x1b8] sm:$0xff]
        %v408 = vld [vmem:[#allocation5 + $0x1c0] sm:$0xff]
        %v409 = vld [vmem:[#allocation5 + $0x1c8] sm:$0xff]
        %v410 = vld [vmem:[#allocation5 + $0x1d0] sm:$0xff]
        %v411 = vld [vmem:[#allocation5 + $0x1d8] sm:$0xff]
        %v412 = vld [vmem:[#allocation5 + $0x1e0] sm:$0xff]
        %v413 = vld [vmem:[#allocation5 + $0x1e8] sm:$0xff]
        %v414 = vld [vmem:[#allocation5 + $0x1f0] sm:$0xff]
        %v415 = vld [vmem:[#allocation5 + $0x1f8] sm:$0xff]
        %v416 = vld [vmem:[#allocation5 + $0x200] sm:$0xff]
        %v417 = vld [vmem:[#allocation5 + $0x208] sm:$0xff]
        %v418 = vld [vmem:[#allocation5 + $0x210] sm:$0xff]
        %v419 = vld [vmem:[#allocation5 + $0x218] sm:$0xff]
        %v420 = vld [vmem:[#allocation5 + $0x220] sm:$0xff]
        %v421 = vld [vmem:[#allocation5 + $0x228] sm:$0xff]
        %v422 = vld [vmem:[#allocation5 + $0x230] sm:$0xff]
        %v423 = vld [vmem:[#allocation5 + $0x238] sm:$0xff]
        %v424 = vld [vmem:[#allocation5 + $0x240] sm:$0xff]
        %v425 = vld [vmem:[#allocation5 + $0x248] sm:$0xff]
        %v426 = vld [vmem:[#allocation5 + $0x250] sm:$0xff]
        %v427 = vld [vmem:[#allocation5 + $0x258] sm:$0xff]
        %v428 = vld [vmem:[#allocation5 + $0x260] sm:$0xff]
        %v429 = vld [vmem:[#allocation5 + $0x268] sm:$0xff]
        %v430 = vld [vmem:[#allocation5 + $0x270] sm:$0xff]
        %v431 = vld [vmem:[#allocation5 + $0x278] sm:$0xff]
        %v432 = vld [vmem:[#allocation5 + $0x280] sm:$0xff]
        %v433 = vld [vmem:[#allocation5 + $0x288] sm:$0xff]
        %v434 = vld [vmem:[#allocation5 + $0x290] sm:$0xff]
        %v435 = vld [vmem:[#allocation5 + $0x298] sm:$0xff]
        %v436 = vld [vmem:[#allocation5 + $0x2a0] sm:$0xff]
        %v437 = vld [vmem:[#allocation5 + $0x2a8] sm:$0xff]
        %v438 = vld [vmem:[#allocation5 + $0x2b0] sm:$0xff]
        %v439 = vld [vmem:[#allocation5 + $0x2b8] sm:$0xff]
        %v440 = vld [vmem:[#allocation5 + $0x2c0] sm:$0xff]
        %v441 = vld [vmem:[#allocation5 + $0x2c8] sm:$0xff]
        %v442 = vld [vmem:[#allocation5 + $0x2d0] sm:$0xff]
        %v443 = vld [vmem:[#allocation5 + $0x2d8] sm:$0xff]
        %v444 = vld [vmem:[#allocation5 + $0x2e0] sm:$0xff]
        %v445 = vld [vmem:[#allocation5 + $0x2e8] sm:$0xff]
        %v446 = vld [vmem:[#allocation5 + $0x2f0] sm:$0xff]
        %v447 = vld [vmem:[#allocation5 + $0x2f8] sm:$0xff]
        %v448 = vld [vmem:[#allocation5 + $0x300] sm:$0xff]
        %v449 = vld [vmem:[#allocation5 + $0x308] sm:$0xff]
        %v450 = vld [vmem:[#allocation5 + $0x310] sm:$0xff]
        %v451 = vld [vmem:[#allocation5 + $0x318] sm:$0xff]
        %v452 = vld [vmem:[#allocation5 + $0x320] sm:$0xff]
        %v453 = vld [vmem:[#allocation5 + $0x328] sm:$0xff]
        %v454 = vld [vmem:[#allocation5 + $0x330] sm:$0xff]
        %v455 = vld [vmem:[#allocation5 + $0x338] sm:$0xff]
        %v456 = vld [vmem:[#allocation5 + $0x340] sm:$0xff]
        %v457 = vld [vmem:[#allocation5 + $0x348] sm:$0xff]
        %v458 = vld [vmem:[#allocation5 + $0x350] sm:$0xff]
        %v459 = vld [vmem:[#allocation5 + $0x358] sm:$0xff]
        %v460 = vld [vmem:[#allocation5 + $0x360] sm:$0xff]
        %v461 = vld [vmem:[#allocation5 + $0x368] sm:$0xff]
        %v462 = vld [vmem:[#allocation5 + $0x370] sm:$0xff]
        %v463 = vld [vmem:[#allocation5 + $0x378] sm:$0xff]
        %v464 = vld [vmem:[#allocation5 + $0x380] sm:$0xff]
        %v465 = vld [vmem:[#allocation5 + $0x388] sm:$0xff]
        %v466 = vld [vmem:[#allocation5 + $0x390] sm:$0xff]
        %v467 = vld [vmem:[#allocation5 + $0x398] sm:$0xff]
        %v468 = vld [vmem:[#allocation5 + $0x3a0] sm:$0xff]
        %v469 = vld [vmem:[#allocation5 + $0x3a8] sm:$0xff]
        %v470 = vld [vmem:[#allocation5 + $0x3b0] sm:$0xff]
        %v471 = vld [vmem:[#allocation5 + $0x3b8] sm:$0xff]
        %v472 = vld [vmem:[#allocation5 + $0x3c0] sm:$0xff]
        %v473 = vld [vmem:[#allocation5 + $0x3c8] sm:$0xff]
        %v474 = vld [vmem:[#allocation5 + $0x3d0] sm:$0xff]
        %v475 = vld [vmem:[#allocation5 + $0x3d8] sm:$0xff]
        %v476 = vld [vmem:[#allocation5 + $0x3e0] sm:$0xff]
        %v477 = vld [vmem:[#allocation5 + $0x3e8] sm:$0xff]
        %v478 = vld [vmem:[#allocation5 + $0x3f0] sm:$0xff]
        %v479 = vld [vmem:[#allocation5 + $0x3f8] sm:$0xff]
        %v480 = vld [vmem:[#allocation5 + $0x400] sm:$0xff]
        %v481 = vld [vmem:[#allocation5 + $0x408] sm:$0xff]
        %v482 = vld [vmem:[#allocation5 + $0x410] sm:$0xff]
        %v483 = vld [vmem:[#allocation5 + $0x418] sm:$0xff]
        %v484 = vld [vmem:[#allocation5 + $0x420] sm:$0xff]
        %v485 = vld [vmem:[#allocation5 + $0x428] sm:$0xff]
        %v486 = vld [vmem:[#allocation5 + $0x430] sm:$0xff]
        %v487 = vld [vmem:[#allocation5 + $0x438] sm:$0xff]
        %v488 = vld [vmem:[#allocation5 + $0x440] sm:$0xff]
        %v489 = vld [vmem:[#allocation5 + $0x448] sm:$0xff]
        %v490 = vld [vmem:[#allocation5 + $0x450] sm:$0xff]
        %v491 = vld [vmem:[#allocation5 + $0x458] sm:$0xff]
        %v492 = vld [vmem:[#allocation5 + $0x460] sm:$0xff]
        %v493 = vld [vmem:[#allocation5 + $0x468] sm:$0xff]
        %v494 = vld [vmem:[#allocation5 + $0x470] sm:$0xff]
        %v495 = vld [vmem:[#allocation5 + $0x478] sm:$0xff]
        %v496 = vld [vmem:[#allocation5 + $0x480] sm:$0xff]
        %v497 = vld [vmem:[#allocation5 + $0x488] sm:$0xff]
        %v498 = vld [vmem:[#allocation5 + $0x490] sm:$0xff]
        %v499 = vld [vmem:[#allocation5 + $0x498] sm:$0xff]
        %v500 = vld [vmem:[#allocation5 + $0x4a0] sm:$0xff]
        %v501 = vld [vmem:[#allocation5 + $0x4a8] sm:$0xff]
        %v502 = vld [vmem:[#allocation5 + $0x4b0] sm:$0xff]
        %v503 = vld [vmem:[#allocation5 + $0x4b8] sm:$0xff]
        %v504 = vld [vmem:[#allocation5 + $0x4c0] sm:$0xff]
        %v505 = vld [vmem:[#allocation5 + $0x4c8] sm:$0xff]
        %v506 = vld [vmem:[#allocation5 + $0x4d0] sm:$0xff]
        %v507 = vld [vmem:[#allocation5 + $0x4d8] sm:$0xff]
        %v508 = vld [vmem:[#allocation5 + $0x4e0] sm:$0xff]
        %v509 = vld [vmem:[#allocation5 + $0x4e8] sm:$0xff]
        %v510 = vld [vmem:[#allocation5 + $0x4f0] sm:$0xff]
        %v511 = vld [vmem:[#allocation5 + $0x4f8] sm:$0xff]
        %v512 = vld [vmem:[#allocation5 + $0x500] sm:$0xff]
        %v513 = vld [vmem:[#allocation5 + $0x508] sm:$0xff]
        %v514 = vld [vmem:[#allocation5 + $0x510] sm:$0xff]
        %v515 = vld [vmem:[#allocation5 + $0x518] sm:$0xff]
        %v516 = vld [vmem:[#allocation5 + $0x520] sm:$0xff]
        %v517 = vld [vmem:[#allocation5 + $0x528] sm:$0xff]
        %v518 = vld [vmem:[#allocation5 + $0x530] sm:$0xff]
        %v519 = vld [vmem:[#allocation5 + $0x538] sm:$0xff]
        %v520 = vld [vmem:[#allocation5 + $0x540] sm:$0xff]
        %v521 = vld [vmem:[#allocation5 + $0x548] sm:$0xff]
        %v522 = vld [vmem:[#allocation5 + $0x550] sm:$0xff]
        %v523 = vld [vmem:[#allocation5 + $0x558] sm:$0xff]
        %v524 = vld [vmem:[#allocation5 + $0x560] sm:$0xff]
        %v525 = vld [vmem:[#allocation5 + $0x568] sm:$0xff]
        %v526 = vld [vmem:[#allocation5 + $0x570] sm:$0xff]
        %v527 = vld [vmem:[#allocation5 + $0x578] sm:$0xff]
        %v528 = vld [vmem:[#allocation5 + $0x580] sm:$0xff]
        %v529 = vld [vmem:[#allocation5 + $0x588] sm:$0xff]
        %v530 = vld [vmem:[#allocation5 + $0x590] sm:$0xff]
        %v531 = vld [vmem:[#allocation5 + $0x598] sm:$0xff]
        %v532 = vld [vmem:[#allocation5 + $0x5a0] sm:$0xff]
        %v533 = vld [vmem:[#allocation5 + $0x5a8] sm:$0xff]
        %v534 = vld [vmem:[#allocation5 + $0x5b0] sm:$0xff]
        %v535 = vld [vmem:[#allocation5 + $0x5b8] sm:$0xff]
        %v536 = vld [vmem:[#allocation5 + $0x5c0] sm:$0xff]
        %v537 = vld [vmem:[#allocation5 + $0x5c8] sm:$0xff]
        %v538 = vld [vmem:[#allocation5 + $0x5d0] sm:$0xff]
        %v539 = vld [vmem:[#allocation5 + $0x5d8] sm:$0xff]
        %v540 = vld [vmem:[#allocation5 + $0x5e0] sm:$0xff]
        %v541 = vld [vmem:[#allocation5 + $0x5e8] sm:$0xff]
        %v542 = vld [vmem:[#allocation5 + $0x5f0] sm:$0xff]
        %v543 = vld [vmem:[#allocation5 + $0x5f8] sm:$0xff]
        %v544 = vld [vmem:[#allocation5 + $0x600] sm:$0xff]
        %v545 = vld [vmem:[#allocation5 + $0x608] sm:$0xff]
        %v546 = vld [vmem:[#allocation5 + $0x610] sm:$0xff]
        %v547 = vld [vmem:[#allocation5 + $0x618] sm:$0xff]
        %v548 = vld [vmem:[#allocation5 + $0x620] sm:$0xff]
        %v549 = vld [vmem:[#allocation5 + $0x628] sm:$0xff]
        %v550 = vld [vmem:[#allocation5 + $0x630] sm:$0xff]
        %v551 = vld [vmem:[#allocation5 + $0x638] sm:$0xff]
        %v552 = vld [vmem:[#allocation5 + $0x640] sm:$0xff]
        %v553 = vld [vmem:[#allocation5 + $0x648] sm:$0xff]
        %v554 = vld [vmem:[#allocation5 + $0x650] sm:$0xff]
        %v555 = vld [vmem:[#allocation5 + $0x658] sm:$0xff]
        %v556 = vld [vmem:[#allocation5 + $0x660] sm:$0xff]
        %v557 = vld [vmem:[#allocation5 + $0x668] sm:$0xff]
        %v558 = vld [vmem:[#allocation5 + $0x670] sm:$0xff]
        %v559 = vld [vmem:[#allocation5 + $0x678] sm:$0xff]
        %v560 = vld [vmem:[#allocation5 + $0x680] sm:$0xff]
        %v561 = vld [vmem:[#allocation5 + $0x688] sm:$0xff]
        %v562 = vld [vmem:[#allocation5 + $0x690] sm:$0xff]
        %v563 = vld [vmem:[#allocation5 + $0x698] sm:$0xff]
        %v564 = vld [vmem:[#allocation5 + $0x6a0] sm:$0xff]
        %v565 = vld [vmem:[#allocation5 + $0x6a8] sm:$0xff]
        %v566 = vld [vmem:[#allocation5 + $0x6b0] sm:$0xff]
        %v567 = vld [vmem:[#allocation5 + $0x6b8] sm:$0xff]
        %v568 = vld [vmem:[#allocation5 + $0x6c0] sm:$0xff]
        %v569 = vld [vmem:[#allocation5 + $0x6c8] sm:$0xff]
        %v570 = vld [vmem:[#allocation5 + $0x6d0] sm:$0xff]
        %v571 = vld [vmem:[#allocation5 + $0x6d8] sm:$0xff]
        %v572 = vld [vmem:[#allocation5 + $0x6e0] sm:$0xff]
        %v573 = vld [vmem:[#allocation5 + $0x6e8] sm:$0xff]
        %v574 = vld [vmem:[#allocation5 + $0x6f0] sm:$0xff]
        %v575 = vld [vmem:[#allocation5 + $0x6f8] sm:$0xff]
        %v576 = vld [vmem:[#allocation5 + $0x700] sm:$0xff]
        %v577 = vld [vmem:[#allocation5 + $0x708] sm:$0xff]
        %v578 = vld [vmem:[#allocation5 + $0x710] sm:$0xff]
        %v579 = vld [vmem:[#allocation5 + $0x718] sm:$0xff]
        %v580 = vld [vmem:[#allocation5 + $0x720] sm:$0xff]
        %v581 = vld [vmem:[#allocation5 + $0x728] sm:$0xff]
        %v582 = vld [vmem:[#allocation5 + $0x730] sm:$0xff]
        %v583 = vld [vmem:[#allocation5 + $0x738] sm:$0xff]
        %v584 = vld [vmem:[#allocation5 + $0x740] sm:$0xff]
        %v585 = vld [vmem:[#allocation5 + $0x748] sm:$0xff]
        %v586 = vld [vmem:[#allocation5 + $0x750] sm:$0xff]
        %v587 = vld [vmem:[#allocation5 + $0x758] sm:$0xff]
        %v588 = vld [vmem:[#allocation5 + $0x760] sm:$0xff]
        %v589 = vld [vmem:[#allocation5 + $0x768] sm:$0xff]
        %v590 = vld [vmem:[#allocation5 + $0x770] sm:$0xff]
        %v591 = vld [vmem:[#allocation5 + $0x778] sm:$0xff]
        %v592 = vld [vmem:[#allocation5 + $0x780] sm:$0xff]
        %v593 = vld [vmem:[#allocation5 + $0x788] sm:$0xff]
        %v594 = vld [vmem:[#allocation5 + $0x790] sm:$0xff]
        %v595 = vld [vmem:[#allocation5 + $0x798] sm:$0xff]
        %v596 = vld [vmem:[#allocation5 + $0x7a0] sm:$0xff]
        %v597 = vld [vmem:[#allocation5 + $0x7a8] sm:$0xff]
        %v598 = vld [vmem:[#allocation5 + $0x7b0] sm:$0xff]
        %v599 = vld [vmem:[#allocation5 + $0x7b8] sm:$0xff]
        %v600 = vld [vmem:[#allocation5 + $0x7c0] sm:$0xff]
        %v601 = vld [vmem:[#allocation5 + $0x7c8] sm:$0xff]
        %v602 = vld [vmem:[#allocation5 + $0x7d0] sm:$0xff]
        %v603 = vld [vmem:[#allocation5 + $0x7d8] sm:$0xff]
        %v604 = vld [vmem:[#allocation5 + $0x7e0] sm:$0xff]
        %v605 = vld [vmem:[#allocation5 + $0x7e8] sm:$0xff]
        %v606 = vld [vmem:[#allocation5 + $0x7f0] sm:$0xff]
        %v607 = vld [vmem:[#allocation5 + $0x7f8] sm:$0xff]
        %v608 = vld [vmem:[%s244] sm:$0xff]
        %v609 = vld [vmem:[%s244 + $0x8] sm:$0xff]
        %v610 = vld [vmem:[%s244 + $0x10] sm:$0xff]
        %v611 = vld [vmem:[%s244 + $0x18] sm:$0xff]
        %v616 = vcombine.high %v608, %v608
        %v617 = vcombine.high %v609, %v609
        %v618 = vcombine.high %v610, %v610
        %v619 = vcombine.high %v611, %v611
        %624 = vmatprep.subr.mxu0 %v473
        %625 = vmatpush1.msra.mxu0 %v472
        %626 = vmatprep.subr.mxu0 %v465
        %627 = vmatpush1.msra.mxu0 %v464
        %628 = vmatprep.subr.mxu0 %v457
        %629 = vmatpush1.msra.mxu0 %v456
        %630 = vmatprep.subr.mxu0 %v449
        %631 = vmatpush1.msra.mxu0 %v448
        %632 = vmatprep.subr.mxu0 %v441
        %633 = vmatpush1.msra.mxu0 %v440
        %634 = vmatprep.subr.mxu0 %v433
        %635 = vmatpush1.msra.mxu0 %v432
        %636 = vmatprep.subr.mxu0 %v425
        %637 = vmatpush1.msra.mxu0 %v424
        %638 = vmatprep.subr.mxu0 %v417
        %639 = vmatpush1.msra.mxu0 %v416
        %640 = vmatprep.subr.mxu0 %v409
        %641 = vmatpush1.msra.mxu0 %v408
        %642 = vmatprep.subr.mxu0 %v401
        %643 = vmatpush1.msra.mxu0 %v400
        %644 = vmatprep.subr.mxu0 %v393
        %645 = vmatpush1.msra.mxu0 %v392
        %646 = vmatprep.subr.mxu0 %v385
        %647 = vmatpush1.msra.mxu0 %v384
        %648 = vmatprep.subr.mxu0 %v377
        %649 = vmatpush1.msra.mxu0 %v376
        %650 = vmatprep.subr.mxu0 %v369
        %651 = vmatpush1.msra.mxu0 %v368
        %652 = vmatprep.subr.mxu0 %v361
        %653 = vmatpush1.msra.mxu0 %v360
        %654 = vmatprep.subr.mxu0 %v353
        %655 = vmatpush1.msra.mxu0 %v352
        %656 = vmatprep.subr.mxu0 %v601
        %657 = vmatpush2.msra.mxu0 %v600
        %658 = vmatprep.subr.mxu0 %v593
        %659 = vmatpush2.msra.mxu0 %v592
        %660 = vmatprep.subr.mxu0 %v585
        %661 = vmatpush2.msra.mxu0 %v584
        %662 = vmatprep.subr.mxu0 %v577
        %663 = vmatpush2.msra.mxu0 %v576
        %664 = vmatprep.subr.mxu0 %v569
        %665 = vmatpush2.msra.mxu0 %v568
        %666 = vmatprep.subr.mxu0 %v561
        %667 = vmatpush2.msra.mxu0 %v560
        %668 = vmatprep.subr.mxu0 %v553
        %669 = vmatpush2.msra.mxu0 %v552
        %670 = vmatprep.subr.mxu0 %v545
        %671 = vmatpush2.msra.mxu0 %v544
        %672 = vmatprep.subr.mxu0 %v537
        %673 = vmatpush2.msra.mxu0 %v536
        %674 = vmatprep.subr.mxu0 %v529
        %675 = vmatpush2.msra.mxu0 %v528
        %676 = vmatprep.subr.mxu0 %v521
        %677 = vmatpush2.msra.mxu0 %v520
        %678 = vmatprep.subr.mxu0 %v513
        %679 = vmatpush2.msra.mxu0 %v512
        %680 = vmatprep.subr.mxu0 %v505
        %681 = vmatpush2.msra.mxu0 %v504
        %682 = vmatprep.subr.mxu0 %v497
        %683 = vmatpush2.msra.mxu0 %v496
        %684 = vmatprep.subr.mxu0 %v489
        %685 = vmatpush2.msra.mxu0 %v488
        %686 = vmatprep.subr.mxu0 %v481
        %687 = vmatpush2.msra.mxu0 %v480
        %688 = vmatprep.mubr.f32.mxu0 %v350
        %689 = vmatmul.mubr.f32.gmra.mxu0 %v348
        %v690 = vpop.f32.mrf.mxu0
        %v691 = vadd.f32 %v608, %v690
        %v692 = vpop.f32.mrf.mxu0
        %v693 = vadd.f32 %v616, %v692
        %694 = vdwg.mxu0
        %695 = vmatprep.subr.mxu0 %v475
        %696 = vmatpush1.msra.mxu0 %v474
        %697 = vmatprep.subr.mxu0 %v467
        %698 = vmatpush1.msra.mxu0 %v466
        %699 = vmatprep.subr.mxu0 %v459
        %700 = vmatpush1.msra.mxu0 %v458
        %701 = vmatprep.subr.mxu0 %v451
        %702 = vmatpush1.msra.mxu0 %v450
        %703 = vmatprep.subr.mxu0 %v443
        %704 = vmatpush1.msra.mxu0 %v442
        %705 = vmatprep.subr.mxu0 %v435
        %706 = vmatpush1.msra.mxu0 %v434
        %707 = vmatprep.subr.mxu0 %v427
        %708 = vmatpush1.msra.mxu0 %v426
        %709 = vmatprep.subr.mxu0 %v419
        %710 = vmatpush1.msra.mxu0 %v418
        %711 = vmatprep.subr.mxu0 %v411
        %712 = vmatpush1.msra.mxu0 %v410
        %713 = vmatprep.subr.mxu0 %v403
        %714 = vmatpush1.msra.mxu0 %v402
        %715 = vmatprep.subr.mxu0 %v395
        %716 = vmatpush1.msra.mxu0 %v394
        %717 = vmatprep.subr.mxu0 %v387
        %718 = vmatpush1.msra.mxu0 %v386
        %719 = vmatprep.subr.mxu0 %v379
        %720 = vmatpush1.msra.mxu0 %v378
        %721 = vmatprep.subr.mxu0 %v371
        %722 = vmatpush1.msra.mxu0 %v370
        %723 = vmatprep.subr.mxu0 %v363
        %724 = vmatpush1.msra.mxu0 %v362
        %725 = vmatprep.subr.mxu0 %v355
        %726 = vmatpush1.msra.mxu0 %v354
        %727 = vmatprep.subr.mxu0 %v603
        %728 = vmatpush2.msra.mxu0 %v602
        %729 = vmatprep.subr.mxu0 %v595
        %730 = vmatpush2.msra.mxu0 %v594
        %731 = vmatprep.subr.mxu0 %v587
        %732 = vmatpush2.msra.mxu0 %v586
        %733 = vmatprep.subr.mxu0 %v579
        %734 = vmatpush2.msra.mxu0 %v578
        %735 = vmatprep.subr.mxu0 %v571
        %736 = vmatpush2.msra.mxu0 %v570
        %737 = vmatprep.subr.mxu0 %v563
        %738 = vmatpush2.msra.mxu0 %v562
        %739 = vmatprep.subr.mxu0 %v555
        %740 = vmatpush2.msra.mxu0 %v554
        %741 = vmatprep.subr.mxu0 %v547
        %742 = vmatpush2.msra.mxu0 %v546
        %743 = vmatprep.subr.mxu0 %v539
        %744 = vmatpush2.msra.mxu0 %v538
        %745 = vmatprep.subr.mxu0 %v531
        %746 = vmatpush2.msra.mxu0 %v530
        %747 = vmatprep.subr.mxu0 %v523
        %748 = vmatpush2.msra.mxu0 %v522
        %749 = vmatprep.subr.mxu0 %v515
        %750 = vmatpush2.msra.mxu0 %v514
        %751 = vmatprep.subr.mxu0 %v507
        %752 = vmatpush2.msra.mxu0 %v506
        %753 = vmatprep.subr.mxu0 %v499
        %754 = vmatpush2.msra.mxu0 %v498
        %755 = vmatprep.subr.mxu0 %v491
        %756 = vmatpush2.msra.mxu0 %v490
        %757 = vmatprep.subr.mxu0 %v483
        %758 = vmatpush2.msra.mxu0 %v482
        %759 = vmatprep.mubr.f32.mxu0 %v350
        %760 = vmatmul.mubr.f32.gmra.mxu0 %v348
        %v761 = vpop.f32.mrf.mxu0
        %v762 = vadd.f32 %v609, %v761
        %v763 = vpop.f32.mrf.mxu0
        %v764 = vadd.f32 %v617, %v763
        %765 = vdwg.mxu0
        %766 = vmatprep.subr.mxu0 %v477
        %767 = vmatpush1.msra.mxu0 %v476
        %768 = vmatprep.subr.mxu0 %v469
        %769 = vmatpush1.msra.mxu0 %v468
        %770 = vmatprep.subr.mxu0 %v461
        %771 = vmatpush1.msra.mxu0 %v460
        %772 = vmatprep.subr.mxu0 %v453
        %773 = vmatpush1.msra.mxu0 %v452
        %774 = vmatprep.subr.mxu0 %v445
        %775 = vmatpush1.msra.mxu0 %v444
        %776 = vmatprep.subr.mxu0 %v437
        %777 = vmatpush1.msra.mxu0 %v436
        %778 = vmatprep.subr.mxu0 %v429
        %779 = vmatpush1.msra.mxu0 %v428
        %780 = vmatprep.subr.mxu0 %v421
        %781 = vmatpush1.msra.mxu0 %v420
        %782 = vmatprep.subr.mxu0 %v413
        %783 = vmatpush1.msra.mxu0 %v412
        %784 = vmatprep.subr.mxu0 %v405
        %785 = vmatpush1.msra.mxu0 %v404
        %786 = vmatprep.subr.mxu0 %v397
        %787 = vmatpush1.msra.mxu0 %v396
        %788 = vmatprep.subr.mxu0 %v389
        %789 = vmatpush1.msra.mxu0 %v388
        %790 = vmatprep.subr.mxu0 %v381
        %791 = vmatpush1.msra.mxu0 %v380
        %792 = vmatprep.subr.mxu0 %v373
        %793 = vmatpush1.msra.mxu0 %v372
        %794 = vmatprep.subr.mxu0 %v365
        %795 = vmatpush1.msra.mxu0 %v364
        %796 = vmatprep.subr.mxu0 %v357
        %797 = vmatpush1.msra.mxu0 %v356
        %798 = vmatprep.subr.mxu0 %v605
        %799 = vmatpush2.msra.mxu0 %v604
        %800 = vmatprep.subr.mxu0 %v597
        %801 = vmatpush2.msra.mxu0 %v596
        %802 = vmatprep.subr.mxu0 %v589
        %803 = vmatpush2.msra.mxu0 %v588
        %804 = vmatprep.subr.mxu0 %v581
        %805 = vmatpush2.msra.mxu0 %v580
        %806 = vmatprep.subr.mxu0 %v573
        %807 = vmatpush2.msra.mxu0 %v572
        %808 = vmatprep.subr.mxu0 %v565
        %809 = vmatpush2.msra.mxu0 %v564
        %810 = vmatprep.subr.mxu0 %v557
        %811 = vmatpush2.msra.mxu0 %v556
        %812 = vmatprep.subr.mxu0 %v549
        %813 = vmatpush2.msra.mxu0 %v548
        %814 = vmatprep.subr.mxu0 %v541
        %815 = vmatpush2.msra.mxu0 %v540
        %816 = vmatprep.subr.mxu0 %v533
        %817 = vmatpush2.msra.mxu0 %v532
        %818 = vmatprep.subr.mxu0 %v525
        %819 = vmatpush2.msra.mxu0 %v524
        %820 = vmatprep.subr.mxu0 %v517
        %821 = vmatpush2.msra.mxu0 %v516
        %822 = vmatprep.subr.mxu0 %v509
        %823 = vmatpush2.msra.mxu0 %v508
        %824 = vmatprep.subr.mxu0 %v501
        %825 = vmatpush2.msra.mxu0 %v500
        %826 = vmatprep.subr.mxu0 %v493
        %827 = vmatpush2.msra.mxu0 %v492
        %828 = vmatprep.subr.mxu0 %v485
        %829 = vmatpush2.msra.mxu0 %v484
        %830 = vmatprep.mubr.f32.mxu0 %v350
        %831 = vmatmul.mubr.f32.gmra.mxu0 %v348
        %v832 = vpop.f32.mrf.mxu0
        %v833 = vadd.f32 %v610, %v832
        %v834 = vpop.f32.mrf.mxu0
        %v835 = vadd.f32 %v618, %v834
        %836 = vdwg.mxu0
        %837 = vmatprep.subr.mxu0 %v479
        %838 = vmatpush1.msra.mxu0 %v478
        %839 = vmatprep.subr.mxu0 %v471
        %840 = vmatpush1.msra.mxu0 %v470
        %841 = vmatprep.subr.mxu0 %v463
        %842 = vmatpush1.msra.mxu0 %v462
        %843 = vmatprep.subr.mxu0 %v455
        %844 = vmatpush1.msra.mxu0 %v454
        %845 = vmatprep.subr.mxu0 %v447
        %846 = vmatpush1.msra.mxu0 %v446
        %847 = vmatprep.subr.mxu0 %v439
        %848 = vmatpush1.msra.mxu0 %v438
        %849 = vmatprep.subr.mxu0 %v431
        %850 = vmatpush1.msra.mxu0 %v430
        %851 = vmatprep.subr.mxu0 %v423
        %852 = vmatpush1.msra.mxu0 %v422
        %853 = vmatprep.subr.mxu0 %v415
        %854 = vmatpush1.msra.mxu0 %v414
        %855 = vmatprep.subr.mxu0 %v407
        %856 = vmatpush1.msra.mxu0 %v406
        %857 = vmatprep.subr.mxu0 %v399
        %858 = vmatpush1.msra.mxu0 %v398
        %859 = vmatprep.subr.mxu0 %v391
        %860 = vmatpush1.msra.mxu0 %v390
        %861 = vmatprep.subr.mxu0 %v383
        %862 = vmatpush1.msra.mxu0 %v382
        %863 = vmatprep.subr.mxu0 %v375
        %864 = vmatpush1.msra.mxu0 %v374
        %865 = vmatprep.subr.mxu0 %v367
        %866 = vmatpush1.msra.mxu0 %v366
        %867 = vmatprep.subr.mxu0 %v359
        %868 = vmatpush1.msra.mxu0 %v358
        %869 = vmatprep.subr.mxu0 %v607
        %870 = vmatpush2.msra.mxu0 %v606
        %871 = vmatprep.subr.mxu0 %v599
        %872 = vmatpush2.msra.mxu0 %v598
        %873 = vmatprep.subr.mxu0 %v591
        %874 = vmatpush2.msra.mxu0 %v590
        %875 = vmatprep.subr.mxu0 %v583
        %876 = vmatpush2.msra.mxu0 %v582
        %877 = vmatprep.subr.mxu0 %v575
        %878 = vmatpush2.msra.mxu0 %v574
        %879 = vmatprep.subr.mxu0 %v567
        %880 = vmatpush2.msra.mxu0 %v566
        %881 = vmatprep.subr.mxu0 %v559
        %882 = vmatpush2.msra.mxu0 %v558
        %883 = vmatprep.subr.mxu0 %v551
        %884 = vmatpush2.msra.mxu0 %v550
        %885 = vmatprep.subr.mxu0 %v543
        %886 = vmatpush2.msra.mxu0 %v542
        %887 = vmatprep.subr.mxu0 %v535
        %888 = vmatpush2.msra.mxu0 %v534
        %889 = vmatprep.subr.mxu0 %v527
        %890 = vmatpush2.msra.mxu0 %v526
        %891 = vmatprep.subr.mxu0 %v519
        %892 = vmatpush2.msra.mxu0 %v518
        %893 = vmatprep.subr.mxu0 %v511
        %894 = vmatpush2.msra.mxu0 %v510
        %895 = vmatprep.subr.mxu0 %v503
        %896 = vmatpush2.msra.mxu0 %v502
        %897 = vmatprep.subr.mxu0 %v495
        %898 = vmatpush2.msra.mxu0 %v494
        %899 = vmatprep.subr.mxu0 %v487
        %900 = vmatpush2.msra.mxu0 %v486
        %901 = vmatprep.mubr.f32.mxu0 %v350
        %902 = vmatmul.mubr.f32.gmra.mxu0 %v348
        %v903 = vpop.f32.mrf.mxu0
        %v904 = vadd.f32 %v611, %v903
        %v905 = vpop.f32.mrf.mxu0
        %v906 = vadd.f32 %v619, %v905
        %907 = vdwg.mxu0
        %v916 = vcombine.low %v691, %v693
        %v917 = vcombine.low %v762, %v764
        %v918 = vcombine.low %v833, %v835
        %v919 = vcombine.low %v904, %v906
        %924 = vst [vmem:[%s273] sm:$0xff] %v916
        %925 = vst [vmem:[%s273 + $0x8] sm:$0xff] %v917
        %926 = vst [vmem:[%s273 + $0x10] sm:$0xff] %v918
        %927 = vst [vmem:[%s273 + $0x18] sm:$0xff] %v919
        %s928 = sand.u32 %s122, 1
        %s929 = scalar_lea.sflag [#allocation4], %s928
        %s930 = sand.u32 %s122, 1
        %s931 = smul.addr %s930, 32
        %s932 = scalar_lea.vmem [#allocation9], %s931
        // Predicated region
        $region53: #{tpu_custom_call.1} parent=35 // pred_check
          %p933 = pneg %p132
        $region54: #{tpu_custom_call.1} parent=35 // pred_check_branch
          %935 = sbr.rel (%p933) target = $region56
        $region55: #{tpu_custom_call.1} parent=35 // pred_region
          %s937 = ssub.s32 512, 512
          %938 = vsyncadd %s929, %s937
          %s939 = smul.addr %s20, 8
          %s940 = smul.addr %s939, 64
          %s941 = scalar_lea.hbm %s4, %s940
          %s943 = sshll.u32 %s932, 4
          %s944 = int_to_ptr.vmem [resolvable:$true] %s943
          %946 = dma.vmem_to_hbm [thread:$0]  %s944, 512, %s941, %s929
        $region56: #{tpu_custom_call.1} parent=35 // pred_fallthru
          _
      $region36: #{tpu_custom_call.1} parent=5 // pred_fallthru
        _
      %p947 = scmp.le.s32.totalorder 2, %s15
      // Predicated region
      $region57: #{tpu_custom_call.1} parent=5 // pred_check
        %p948 = pneg %p947
      $region58: #{tpu_custom_call.1} parent=5 // pred_check_branch
        %950 = sbr.rel (%p948) target = $region60
      $region59: #{tpu_custom_call.1} parent=5 // pred_region
        %s951 = ssub.s32 %s15, 2
        // Predicated region
        $region61: #{tpu_custom_call.1} parent=59 // pred_check
          %p952 = pneg %p138
        $region62: #{tpu_custom_call.1} parent=59 // pred_check_branch
          %954 = sbr.rel (%p952) target = $region64
        $region63: #{tpu_custom_call.1} parent=59 // pred_region
          %s955 = sand.u32 %s123, 1
          %s956 = scalar_lea.sflag [#allocation4], %s955
          %s957 = sand.u32 %s123, 1
          %s958 = smul.addr %s957, 32
          %s959 = scalar_lea.vmem [#allocation9], %s958
          %960 = dma.done %s956, 512
        $region64: #{tpu_custom_call.1} parent=59 // pred_fallthru
          _
      $region60: #{tpu_custom_call.1} parent=5 // pred_fallthru
        _
    $region6: #{tpu_custom_call.1} parent=1 // loop_footer
      %s19 = sadd.s32 1, %s15
    $region7: #{tpu_custom_call.1} parent=1 // loop_footer_branch
      %14 = sbr.rel target = $region3
    $region8: #{tpu_custom_call.1} parent=1 // loop_exit
      _
    %961 = vsyncpa [#allocation3], 1
    %s962 = scalar_lea.sflag [#allocation3], 1
    %963 = vsyncpa %s962, 1
    %964 = vsyncpa [#allocation6], 1
    %965 = vsyncpa [#allocation4], 1
    %s966 = scalar_lea.sflag [#allocation4], 1
    %967 = vsyncpa %s966, 1

</llo_original>
